<compile_context>
chip_gen: v7x
topology: tpu7x:2x2x1
jax: 0.10.0
libtpu: 0.0.40
codegen_flags: <defaults>
</compile_context>

<pallas_src>
import functools

import jax
import jax.numpy as jnp
from jax.experimental import pallas as pl
from jax.experimental.pallas import tpu as pltpu

LAMBDA1 = 0.1   # pix loss weight (L1Loss branch of TotalLoss)
LAMBDA2 = 1.0   # ssim loss weight
LAMBDA3 = 1.0   # edge loss weight (MSE)
C1 = 0.01 ** 2
C2 = 0.03 ** 2


def _gaussian_1d(size=11, sigma=1.5):
    coords = jnp.arange(size, dtype=jnp.float32) - (size // 2)
    g = jnp.exp(-(coords ** 2) / (2.0 * sigma ** 2))
    return g / jnp.sum(g)


def _conv_matrix(n, g):
    """Banded (n,n) M s.t. M @ x == 1-D 'same' (zero-pad) conv of x with g.

    g is a symmetric Gaussian, so M is symmetric (M == M.T).
    """
    size = g.shape[0]
    pad = size // 2
    idx = jnp.arange(n)
    diff = idx[None, :] - idx[:, None] + pad          # tap index into g
    valid = (diff >= 0) & (diff < size)
    return jnp.where(valid, g[jnp.clip(diff, 0, size - 1)], 0.0).astype(jnp.float32)


def _total_loss_kernel(a_ref, bp_ref, xy_ref, out_ref, *, h):
    # One block: P planes packed side-by-side along lanes, x stacked over y
    # along sublanes -> (2H, P*W).  Cast to f32 in-kernel (v5e-safe VPU math).
    xy = xy_ref[0].astype(jnp.float32)
    x = xy[:h]
    y = xy[h:]
    a = a_ref[...]                    # (H, H)   symmetric Gaussian band matrix
    bp = bp_ref[...]                  # (PW, PW) kron(I_P, B), blurs along W

    # Stack the 5 quantities SSIM needs blurred along sublanes and do the
    # W-side blur as ONE matmul (B symmetric -> no transpose needed).
    s = jnp.concatenate([x, y, x * x, y * y, x * y], axis=0)          # (5H, PW)
    t = jnp.dot(s, bp, preferred_element_type=jnp.float32)            # (5H, PW)

    # H-side blur: five plain (H,H)@(H,PW) dots — no kron(I_5, A), no
    # structural-zero FLOPs, 25x smaller constant operand.
    mu1  = jnp.dot(a, t[0 * h:1 * h], preferred_element_type=jnp.float32)
    mu2  = jnp.dot(a, t[1 * h:2 * h], preferred_element_type=jnp.float32)
    e_xx = jnp.dot(a, t[2 * h:3 * h], preferred_element_type=jnp.float32)
    e_yy = jnp.dot(a, t[3 * h:4 * h], preferred_element_type=jnp.float32)
    e_xy = jnp.dot(a, t[4 * h:5 * h], preferred_element_type=jnp.float32)

    mu1_sq = mu1 * mu1
    mu2_sq = mu2 * mu2
    mu12 = mu1 * mu2
    sigma1_sq = e_xx - mu1_sq
    sigma2_sq = e_yy - mu2_sq
    sigma12 = e_xy - mu12

    num = (2.0 * mu12 + C1) * (2.0 * sigma12 + C2)
    den = (mu1_sq + mu2_sq + C1) * (sigma1_sq + sigma2_sq + C2)
    # EUP reciprocal (separate issue slot) + one Newton step -> ~f32 accurate.
    r = pl.reciprocal(den, approx=True)
    r = r * (2.0 - den * r)
    ssim_map = num * r                                                # (H, PW)

    d = x - y
    # Sublane-only partial reductions; lane-dense store.  The tiny cross-lane
    # + cross-block reduce happens once, outside the kernel, in plain JAX.
    s_abs  = jnp.sum(jnp.abs(d), axis=0, keepdims=True)               # (1, PW)
    s_sq   = jnp.sum(d * d, axis=0, keepdims=True)                    # (1, PW)
    s_ssim = jnp.sum(ssim_map, axis=0, keepdims=True)                 # (1, PW)
    out_ref[0] = jnp.concatenate([s_abs, s_sq, s_ssim], axis=0)       # (3, PW)


def total_loss(y_pred, y_true, *, window_size=11, sigma=1.5):
    assert y_pred.shape == y_true.shape
    N, C, H, W = y_pred.shape
    planes = N * C

    # --- Lane packing: P planes side-by-side along lanes. ------------------
    P_min = -(-128 // W)                     # lane-density floor (>=128 lanes)
    P_tgt = -(-512 // W)                     # amortize per-step overhead / fill MXU
    P = min(P_tgt, max(P_min, planes))
    P = -(-P // P_min) * P_min               # keep P*W a lane-friendly multiple
    nblocks = -(-planes // P)
    if nblocks < 2 and planes > P_min:       # let v7x's 2nd TensorCore work
        P = -(-max(P_min, -(-planes // 2)) // P_min) * P_min
        nblocks = -(-planes // P)
    pad_planes = nblocks * P - planes

    xp = y_pred.reshape(planes, H, W)
    yt = y_true.reshape(planes, H, W)
    if pad_planes:
        zpad = jnp.zeros((pad_planes, H, W), y_pred.dtype)
        xp = jnp.concatenate([xp, zpad], 0)
        yt = jnp.concatenate([yt, zpad], 0)
    # (nblocks, P, H, W) -> (nblocks, H, P*W): planes interleaved along lanes.
    xp = xp.reshape(nblocks, P, H, W).transpose(0, 2, 1, 3).reshape(nblocks, H, P * W)
    yt = yt.reshape(nblocks, P, H, W).transpose(0, 2, 1, 3).reshape(nblocks, H, P * W)
    # Single packed operand -> one input DMA per grid step.
    xy = jnp.concatenate([xp, yt], axis=1)                    # (nblocks, 2H, P*W)

    g = _gaussian_1d(window_size, sigma)
    A = _conv_matrix(H, g)                                    # (H, H), symmetric
    B = _conv_matrix(W, g)                                    # (W, W), symmetric
    BP = jnp.kron(jnp.eye(P, dtype=jnp.float32), B)           # (P*W, P*W)
    # TODO(synk): if P*W (and hence BP) ever becomes the VMEM limiter, replace
    # the BP matmul with an 11-tap pltpu.roll shifted-add lane blur (masked at
    # plane boundaries) to drop BP from VMEM and move the W-blur off the MXU.

    kernel = functools.partial(_total_loss_kernel, h=H)

    partials = pl.pallas_call(
        kernel,
        out_shape=jax.ShapeDtypeStruct((nblocks, 3, P * W), jnp.float32),
        grid_spec=pltpu.PrefetchScalarGridSpec(
            num_scalar_prefetch=0,
            grid=(nblocks,),
            in_specs=[
                pl.BlockSpec((H, H), lambda b: (0, 0)),               # A
                pl.BlockSpec((P * W, P * W), lambda b: (0, 0)),       # kron(I_P,B)
                pl.BlockSpec((1, 2 * H, P * W), lambda b: (b, 0, 0)), # x over y
            ],
            out_specs=pl.BlockSpec((1, 3, P * W), lambda b: (b, 0, 0)),
        ),
        compiler_params=pltpu.CompilerParams(
            dimension_semantics=("parallel",),
            vmem_limit_bytes=48 * 1024 * 1024),
    )(A, BP, xy)

    # Tiny host-side reduce.  Reduce per-plane first so padded planes can be
    # dropped exactly (no SSIM(0,0)==1 fixup needed).
    per_plane = partials.reshape(nblocks, 3, P, W).sum(axis=-1)       # (nb,3,P)
    per_plane = per_plane.transpose(1, 0, 2).reshape(3, nblocks * P)[:, :planes]
    sums = per_plane.sum(axis=-1)                                     # (3,)

    n = jnp.float32(planes * H * W)
    pix_loss = sums[0] / n            # mean |y_pred - y_true|
    edge_loss = sums[1] / n           # mean (y_pred - y_true)^2
    ssim_val = sums[2] / n            # mean SSIM
    return LAMBDA1 * pix_loss + LAMBDA2 * (1.0 - ssim_val) + LAMBDA3 * edge_loss


# ---------------------------- pure-JAX reference ----------------------------
def _ssim_ref(x, y, window_size=11, sigma=1.5):
    g = _gaussian_1d(window_size, sigma)
    w2d = (g[:, None] * g[None, :]).reshape(1, 1, window_size, window_size)

    def blur(z):
        nc = z.shape[0] * z.shape[1]
        z4 = z.reshape(nc, 1, z.shape[2], z.shape[3])
        out = jax.lax.conv_general_dilated(
            z4, w2d, window_strides=(1, 1), padding="SAME",
            dimension_numbers=("NCHW", "OIHW", "NCHW"),
            precision=jax.lax.Precision.HIGHEST)
        return out.reshape(z.shape)

    mu1, mu2 = blur(x), blur(y)
    s1 = blur(x * x) - mu1 * mu1
    s2 = blur(y * y) - mu2 * mu2
    s12 = blur(x * y) - mu1 * mu2
    ssim_map = ((2.0 * mu1 * mu2 + C1) * (2.0 * s12 + C2)) / (
        (mu1 * mu1 + mu2 * mu2 + C1) * (s1 + s2 + C2))
    return jnp.mean(ssim_map)


def total_loss_ref(y_pred, y_true):
    x = y_pred.astype(jnp.float32)
    y = y_true.astype(jnp.float32)
    pix = jnp.mean(jnp.abs(x - y))
    edge = jnp.mean((x - y) ** 2)
    return LAMBDA1 * pix + LAMBDA2 * (1.0 - _ssim_ref(x, y)) + LAMBDA3 * edge


if __name__ == "__main__":
    key = jax.random.PRNGKey(0)
    k1, k2 = jax.random.split(key)
    N, C, H, W = 2, 4, 16, 16
    y_pred = jax.random.uniform(k1, (N, C, H, W), dtype=jnp.float32)
    y_true = jax.random.uniform(k2, (N, C, H, W), dtype=jnp.float32)

    loss = jax.jit(total_loss)(y_pred, y_true)
    jax.block_until_ready(loss)
    assert loss.shape == () and bool(jnp.isfinite(loss))

    ref = total_loss_ref(y_pred, y_true)
    assert abs(float(loss) - float(ref)) < 5e-3, (float(loss), float(ref))
    print("KERNEL_OK")
</pallas_src>

<mosaic_0001>
module attributes {stable_mosaic.version = 11 : i64} {
  func.func @_total_loss_kernel(%arg0: i32, %arg1: memref<16x16xf32, #tpu.memory_space<vmem>>, %arg2: memref<128x128xf32, #tpu.memory_space<vmem>>, %arg3: memref<1x32x128xf32, #tpu.memory_space<vmem>>, %arg4: memref<1x3x128xf32, #tpu.memory_space<vmem>>) attributes {dimension_semantics = [#tpu.dimension_semantics<parallel>], iteration_bounds = array<i64: 1>, scalar_prefetch = 0 : i64, scratch_operands = 0 : i64, tpu.core_type = #tpu.core_type<tc>, window_params = [{pipeline_mode = #tpu.pipeline_mode<synchronous>, transform_indices = @transform_0, window_bounds = array<i64: 16, 16>}, {pipeline_mode = #tpu.pipeline_mode<synchronous>, transform_indices = @transform_1, window_bounds = array<i64: 128, 128>}, {transform_indices = @transform_2, window_bounds = array<i64: 1, 32, 128>}, {transform_indices = @transform_3, window_bounds = array<i64: 1, 3, 128>}]} {
    %c0 = arith.constant 0 : index
    %c0_0 = arith.constant 0 : index
    %c0_1 = arith.constant 0 : index
    %0 = vector.load %arg3[%c0, %c0_0, %c0_1] : memref<1x32x128xf32, #tpu.memory_space<vmem>>, vector<1x32x128xf32>
    %1 = vector.shape_cast %0 : vector<1x32x128xf32> to vector<32x128xf32>
    %2 = vector.extract_strided_slice %1 {offsets = [0, 0], sizes = [16, 128], strides = [1, 1]} : vector<32x128xf32> to vector<16x128xf32>
    %3 = vector.extract_strided_slice %1 {offsets = [16, 0], sizes = [16, 128], strides = [1, 1]} : vector<32x128xf32> to vector<16x128xf32>
    %c0_2 = arith.constant 0 : index
    %c0_3 = arith.constant 0 : index
    %4 = vector.load %arg1[%c0_2, %c0_3] : memref<16x16xf32, #tpu.memory_space<vmem>>, vector<16x16xf32>
    %c0_4 = arith.constant 0 : index
    %c0_5 = arith.constant 0 : index
    %5 = vector.load %arg2[%c0_4, %c0_5] : memref<128x128xf32, #tpu.memory_space<vmem>>, vector<128x128xf32>
    %6 = arith.mulf %2, %2 : vector<16x128xf32>
    %7 = arith.mulf %3, %3 : vector<16x128xf32>
    %8 = arith.mulf %2, %3 : vector<16x128xf32>
    %9 = tpu.concatenate %2, %3, %6, %7, %8 in 0 : vector<16x128xf32>, vector<16x128xf32>, vector<16x128xf32>, vector<16x128xf32>, vector<16x128xf32> -> vector<80x128xf32>
    %cst = arith.constant dense<0.000000e+00> : vector<80x128xf32>
    %10 = tpu.matmul %9, %5, %cst {dimension_numbers = #tpu.dot_dimension_numbers<[1], [0], [0], [1], [0, 0, 1, 1], [], []>} : vector<80x128xf32>, vector<128x128xf32>, vector<80x128xf32> -> vector<80x128xf32>
    %11 = vector.extract_strided_slice %10 {offsets = [0, 0], sizes = [16, 128], strides = [1, 1]} : vector<80x128xf32> to vector<16x128xf32>
    %cst_6 = arith.constant dense<0.000000e+00> : vector<16x128xf32>
    %12 = tpu.matmul %4, %11, %cst_6 {dimension_numbers = #tpu.dot_dimension_numbers<[1], [0], [0], [1], [0, 0, 1, 1], [], []>} : vector<16x16xf32>, vector<16x128xf32>, vector<16x128xf32> -> vector<16x128xf32>
    %13 = vector.extract_strided_slice %10 {offsets = [16, 0], sizes = [16, 128], strides = [1, 1]} : vector<80x128xf32> to vector<16x128xf32>
    %cst_7 = arith.constant dense<0.000000e+00> : vector<16x128xf32>
    %14 = tpu.matmul %4, %13, %cst_7 {dimension_numbers = #tpu.dot_dimension_numbers<[1], [0], [0], [1], [0, 0, 1, 1], [], []>} : vector<16x16xf32>, vector<16x128xf32>, vector<16x128xf32> -> vector<16x128xf32>
    %15 = vector.extract_strided_slice %10 {offsets = [32, 0], sizes = [16, 128], strides = [1, 1]} : vector<80x128xf32> to vector<16x128xf32>
    %cst_8 = arith.constant dense<0.000000e+00> : vector<16x128xf32>
    %16 = tpu.matmul %4, %15, %cst_8 {dimension_numbers = #tpu.dot_dimension_numbers<[1], [0], [0], [1], [0, 0, 1, 1], [], []>} : vector<16x16xf32>, vector<16x128xf32>, vector<16x128xf32> -> vector<16x128xf32>
    %17 = vector.extract_strided_slice %10 {offsets = [48, 0], sizes = [16, 128], strides = [1, 1]} : vector<80x128xf32> to vector<16x128xf32>
    %cst_9 = arith.constant dense<0.000000e+00> : vector<16x128xf32>
    %18 = tpu.matmul %4, %17, %cst_9 {dimension_numbers = #tpu.dot_dimension_numbers<[1], [0], [0], [1], [0, 0, 1, 1], [], []>} : vector<16x16xf32>, vector<16x128xf32>, vector<16x128xf32> -> vector<16x128xf32>
    %19 = vector.extract_strided_slice %10 {offsets = [64, 0], sizes = [16, 128], strides = [1, 1]} : vector<80x128xf32> to vector<16x128xf32>
    %cst_10 = arith.constant dense<0.000000e+00> : vector<16x128xf32>
    %20 = tpu.matmul %4, %19, %cst_10 {dimension_numbers = #tpu.dot_dimension_numbers<[1], [0], [0], [1], [0, 0, 1, 1], [], []>} : vector<16x16xf32>, vector<16x128xf32>, vector<16x128xf32> -> vector<16x128xf32>
    %21 = arith.mulf %12, %12 : vector<16x128xf32>
    %22 = arith.mulf %14, %14 : vector<16x128xf32>
    %23 = arith.mulf %12, %14 : vector<16x128xf32>
    %24 = arith.subf %16, %21 : vector<16x128xf32>
    %25 = arith.subf %18, %22 : vector<16x128xf32>
    %26 = arith.subf %20, %23 : vector<16x128xf32>
    %cst_11 = arith.constant 2.000000e+00 : f32
    %27 = vector.broadcast %cst_11 : f32 to vector<16x128xf32>
    %28 = arith.mulf %27, %23 : vector<16x128xf32>
    %cst_12 = arith.constant 9.99999974E-5 : f32
    %29 = vector.broadcast %cst_12 : f32 to vector<16x128xf32>
    %30 = arith.addf %28, %29 : vector<16x128xf32>
    %cst_13 = arith.constant 2.000000e+00 : f32
    %31 = vector.broadcast %cst_13 : f32 to vector<16x128xf32>
    %32 = arith.mulf %31, %26 : vector<16x128xf32>
    %cst_14 = arith.constant 8.99999984E-4 : f32
    %33 = vector.broadcast %cst_14 : f32 to vector<16x128xf32>
    %34 = arith.addf %32, %33 : vector<16x128xf32>
    %35 = arith.mulf %30, %34 : vector<16x128xf32>
    %36 = arith.addf %21, %22 : vector<16x128xf32>
    %cst_15 = arith.constant 9.99999974E-5 : f32
    %37 = vector.broadcast %cst_15 : f32 to vector<16x128xf32>
    %38 = arith.addf %36, %37 : vector<16x128xf32>
    %39 = arith.addf %24, %25 : vector<16x128xf32>
    %cst_16 = arith.constant 8.99999984E-4 : f32
    %40 = vector.broadcast %cst_16 : f32 to vector<16x128xf32>
    %41 = arith.addf %39, %40 : vector<16x128xf32>
    %42 = arith.mulf %38, %41 : vector<16x128xf32>
    %43 = tpu.reciprocal %42 {approx = true} : vector<16x128xf32> -> vector<16x128xf32>
    %44 = arith.mulf %42, %43 : vector<16x128xf32>
    %cst_17 = arith.constant 2.000000e+00 : f32
    %45 = vector.broadcast %cst_17 : f32 to vector<16x128xf32>
    %46 = arith.subf %45, %44 : vector<16x128xf32>
    %47 = arith.mulf %43, %46 : vector<16x128xf32>
    %48 = arith.mulf %35, %47 : vector<16x128xf32>
    %49 = arith.subf %2, %3 : vector<16x128xf32>
    %50 = math.absf %49 : vector<16x128xf32>
    %cst_18 = arith.constant dense<0.000000e+00> : vector<128xf32>
    %51 = vector.multi_reduction <add>, %50, %cst_18 [0] : vector<16x128xf32> to vector<128xf32>
    %52 = vector.shape_cast %51 : vector<128xf32> to vector<1x128xf32>
    %53 = arith.mulf %49, %49 : vector<16x128xf32>
    %cst_19 = arith.constant dense<0.000000e+00> : vector<128xf32>
    %54 = vector.multi_reduction <add>, %53, %cst_19 [0] : vector<16x128xf32> to vector<128xf32>
    %55 = vector.shape_cast %54 : vector<128xf32> to vector<1x128xf32>
    %cst_20 = arith.constant dense<0.000000e+00> : vector<128xf32>
    %56 = vector.multi_reduction <add>, %48, %cst_20 [0] : vector<16x128xf32> to vector<128xf32>
    %57 = vector.shape_cast %56 : vector<128xf32> to vector<1x128xf32>
    %58 = tpu.concatenate %52, %55, %57 in 0 : vector<1x128xf32>, vector<1x128xf32>, vector<1x128xf32> -> vector<3x128xf32>
    %c0_21 = arith.constant 0 : index
    %c0_22 = arith.constant 0 : index
    %c0_23 = arith.constant 0 : index
    %59 = vector.load %arg4[%c0_21, %c0_22, %c0_23] : memref<1x3x128xf32, #tpu.memory_space<vmem>>, vector<1x3x128xf32>
    %60 = vector.shape_cast %59 : vector<1x3x128xf32> to vector<3x128xf32>
    %61 = vector.shape_cast %58 : vector<3x128xf32> to vector<1x3x128xf32>
    tpu.vector_store %arg4[%c0_21, %c0_22, %c0_23], %61 {strides = array<i32>} : memref<1x3x128xf32, #tpu.memory_space<vmem>>, vector<1x3x128xf32>,
    return
  }
  func.func @transform_0(%arg0: i32) -> (i32, i32) {
    %c0_i32 = arith.constant 0 : i32
    %c0_i32_0 = arith.constant 0 : i32
    %c0_i32_1 = arith.constant 0 : i32
    return %c0_i32, %c0_i32_0 : i32, i32
  }
  func.func @transform_1(%arg0: i32) -> (i32, i32) {
    %c0_i32 = arith.constant 0 : i32
    %c0_i32_0 = arith.constant 0 : i32
    %c0_i32_1 = arith.constant 0 : i32
    return %c0_i32, %c0_i32_0 : i32, i32
  }
  func.func @transform_2(%arg0: i32) -> (i32, i32, i32) {
    %c0_i32 = arith.constant 0 : i32
    %c0_i32_0 = arith.constant 0 : i32
    %c0_i32_1 = arith.constant 0 : i32
    return %arg0, %c0_i32, %c0_i32_0 : i32, i32, i32
  }
  func.func @transform_3(%arg0: i32) -> (i32, i32, i32) {
    %c0_i32 = arith.constant 0 : i32
    %c0_i32_0 = arith.constant 0 : i32
    %c0_i32_1 = arith.constant 0 : i32
    return %arg0, %c0_i32, %c0_i32_0 : i32, i32, i32
  }
}

</mosaic_0001>

<llo_original>
// kernel: total_loss.1
$region0: #{total_loss.1}
  #allocation0 [shape = 'u32[]', space=smem, size = 0x4, offset = 0x4, fixed_abs, tag = 'smem constant byte address 0x4 - core index']
  #allocation1 [shape = 'u32[144,128]{1,0:T(1,128)}', space=vmem, size = 0x12000, scoped, tag = 'internal scratch']
  %s0 = inlined_call_operand.vmem [shape: f32[16,16], index: 0, kind: input, shape index: {}]
  %s1 = inlined_call_operand.vmem [shape: f32[128,128], index: 1, kind: input, shape index: {}]
  %s2 = inlined_call_operand.vmem [shape: f32[1,32,128], index: 2, kind: input, shape index: {}]
  %s3 = inlined_call_operand.vmem [shape: f32[1,3,128], index: 3, kind: output, shape index: {}]
  %s4 = sld [smem:[#allocation0]]
  $region22: #{total_loss.1} parent=0
    _
  %s6 = ssub.s32 1, %s4
  %s7 = scalar_select 0, %s6, %s4
  // Predicated region
  $region2: #{total_loss.1} parent=0 // pred_check
    _
  $region3: #{total_loss.1} parent=0 // pred_check_branch
    %9 = sbr.rel (0) target = $region5
  $region4: #{total_loss.1} parent=0 // pred_region
    _
  $region5: #{total_loss.1} parent=0 // pred_fallthru
    _
  // Predicated region
  $region6: #{total_loss.1} parent=0 // pred_check
    _
  $region7: #{total_loss.1} parent=0 // pred_check_branch
    %11 = sbr.rel (0) target = $region9
  $region8: #{total_loss.1} parent=0 // pred_region
    _
  $region9: #{total_loss.1} parent=0 // pred_fallthru
    _
  // Predicated region
  $region10: #{total_loss.1} parent=0 // pred_check
    _
  $region11: #{total_loss.1} parent=0 // pred_check_branch
    %13 = sbr.rel (0) target = $region13
  $region12: #{total_loss.1} parent=0 // pred_region
    _
  $region13: #{total_loss.1} parent=0 // pred_fallthru
    _
  %v14 = vld [vmem:[%s2] sm:$0xff]
  %v15 = vld [vmem:[%s2 + $0x8] sm:$0xff]
  %v16 = vld [vmem:[%s2 + $0x10] sm:$0xff]
  %v17 = vld [vmem:[%s2 + $0x18] sm:$0xff]
  %v18 = vld [vmem:[%s0] sm:$0xff]
  %v19 = vld [vmem:[%s0 + $0x8] sm:$0xff]
  %v20 = vld [vmem:[%s1] sm:$0xff]
  %v21 = vld [vmem:[%s1 + $0x8] sm:$0xff]
  %v22 = vld [vmem:[%s1 + $0x10] sm:$0xff]
  %v23 = vld [vmem:[%s1 + $0x18] sm:$0xff]
  %v24 = vld [vmem:[%s1 + $0x20] sm:$0xff]
  %v25 = vld [vmem:[%s1 + $0x28] sm:$0xff]
  %v26 = vld [vmem:[%s1 + $0x30] sm:$0xff]
  %v27 = vld [vmem:[%s1 + $0x38] sm:$0xff]
  %v28 = vld [vmem:[%s1 + $0x40] sm:$0xff]
  %v29 = vld [vmem:[%s1 + $0x48] sm:$0xff]
  %v30 = vld [vmem:[%s1 + $0x50] sm:$0xff]
  %v31 = vld [vmem:[%s1 + $0x58] sm:$0xff]
  %v32 = vld [vmem:[%s1 + $0x60] sm:$0xff]
  %v33 = vld [vmem:[%s1 + $0x68] sm:$0xff]
  %v34 = vld [vmem:[%s1 + $0x70] sm:$0xff]
  %v35 = vld [vmem:[%s1 + $0x78] sm:$0xff]
  %v36 = vmul.f32 %v14, %v14
  %v37 = vmul.f32 %v15, %v15
  %v38 = vmul.f32 %v16, %v16
  %v39 = vmul.f32 %v17, %v17
  %v40 = vmul.f32 %v14, %v16
  %v41 = vmul.f32 %v15, %v17
  %42 = vmatprep.subr.mxu0 0.0
  %43 = vmatpush1.msra.mxu0 %v20
  %44 = vmatprep.subr.mxu0 0.0
  %45 = vmatpush1.msra.mxu0 %v21
  %46 = vmatprep.subr.mxu0 0.0
  %47 = vmatpush1.msra.mxu0 %v22
  %48 = vmatprep.subr.mxu0 0.0
  %49 = vmatpush1.msra.mxu0 %v23
  %50 = vmatprep.subr.mxu0 0.0
  %51 = vmatpush1.msra.mxu0 %v24
  %52 = vmatprep.subr.mxu0 0.0
  %53 = vmatpush1.msra.mxu0 %v25
  %54 = vmatprep.subr.mxu0 0.0
  %55 = vmatpush1.msra.mxu0 %v26
  %56 = vmatprep.subr.mxu0 0.0
  %57 = vmatpush1.msra.mxu0 %v27
  %58 = vmatprep.subr.mxu0 0.0
  %59 = vmatpush1.msra.mxu0 %v28
  %60 = vmatprep.subr.mxu0 0.0
  %61 = vmatpush1.msra.mxu0 %v29
  %62 = vmatprep.subr.mxu0 0.0
  %63 = vmatpush1.msra.mxu0 %v30
  %64 = vmatprep.subr.mxu0 0.0
  %65 = vmatpush1.msra.mxu0 %v31
  %66 = vmatprep.subr.mxu0 0.0
  %67 = vmatpush1.msra.mxu0 %v32
  %68 = vmatprep.subr.mxu0 0.0
  %69 = vmatpush1.msra.mxu0 %v33
  %70 = vmatprep.subr.mxu0 0.0
  %71 = vmatpush1.msra.mxu0 %v34
  %72 = vmatprep.subr.mxu0 0.0
  %73 = vmatpush1.msra.mxu0 %v35
  %74 = vmatprep.subr.mxu0 0.0
  %75 = vmatpush1.msra.mxu0 0.0
  %76 = vmatprep.subr.mxu0 0.0
  %77 = vmatpush1.msra.mxu0 0.0
  %78 = vmatprep.subr.mxu0 0.0
  %79 = vmatpush1.msra.mxu0 0.0
  %80 = vmatprep.subr.mxu0 0.0
  %81 = vmatpush1.msra.mxu0 0.0
  %82 = vmatprep.subr.mxu0 0.0
  %83 = vmatpush1.msra.mxu0 0.0
  %84 = vmatprep.subr.mxu0 0.0
  %85 = vmatpush1.msra.mxu0 0.0
  %86 = vmatprep.subr.mxu0 0.0
  %87 = vmatpush1.msra.mxu0 0.0
  %88 = vmatprep.subr.mxu0 0.0
  %89 = vmatpush1.msra.mxu0 0.0
  %90 = vmatprep.subr.mxu0 0.0
  %91 = vmatpush1.msra.mxu0 0.0
  %92 = vmatprep.subr.mxu0 0.0
  %93 = vmatpush1.msra.mxu0 0.0
  %94 = vmatprep.subr.mxu0 0.0
  %95 = vmatpush1.msra.mxu0 0.0
  %96 = vmatprep.subr.mxu0 0.0
  %97 = vmatpush1.msra.mxu0 0.0
  %98 = vmatprep.subr.mxu0 0.0
  %99 = vmatpush1.msra.mxu0 0.0
  %100 = vmatprep.subr.mxu0 0.0
  %101 = vmatpush1.msra.mxu0 0.0
  %102 = vmatprep.subr.mxu0 0.0
  %103 = vmatpush1.msra.mxu0 0.0
  %104 = vmatprep.subr.mxu0 0.0
  %105 = vmatpush1.msra.mxu0 0.0
  %106 = vmatprep.mubr.f32.mxu0 0.0
  %107 = vmatmul.mubr.f32.gmra.mrb[0].mxu0 %v14
  %v108 = vpop.f32.mrb[0].mxu0
  %v109 = vadd.f32 0.0, %v108
  %v110 = vpop.f32.mrb[0].mxu0
  %111 = vmatprep.mubr.f32.mxu0 0.0
  %112 = vmatmul.mubr.f32.gmra.mrb[0].mxu0 %v15
  %v113 = vpop.f32.mrb[0].mxu0
  %v114 = vadd.f32 0.0, %v113
  %v115 = vpop.f32.mrb[0].mxu0
  %116 = vmatprep.mubr.f32.mxu0 0.0
  %117 = vmatmul.mubr.f32.gmra.mrb[0].mxu0 %v16
  %v118 = vpop.f32.mrb[0].mxu0
  %v119 = vadd.f32 0.0, %v118
  %v120 = vpop.f32.mrb[0].mxu0
  %121 = vmatprep.mubr.f32.mxu0 0.0
  %122 = vmatmul.mubr.f32.gmra.mrb[0].mxu0 %v17
  %v123 = vpop.f32.mrb[0].mxu0
  %v124 = vadd.f32 0.0, %v123
  %v125 = vpop.f32.mrb[0].mxu0
  %126 = vmatprep.mubr.f32.mxu0 0.0
  %127 = vmatmul.mubr.f32.gmra.mrb[0].mxu0 %v36
  %v128 = vpop.f32.mrb[0].mxu0
  %v129 = vadd.f32 0.0, %v128
  %v130 = vpop.f32.mrb[0].mxu0
  %131 = vmatprep.mubr.f32.mxu0 0.0
  %132 = vmatmul.mubr.f32.gmra.mrb[0].mxu0 %v37
  %v133 = vpop.f32.mrb[0].mxu0
  %v134 = vadd.f32 0.0, %v133
  %v135 = vpop.f32.mrb[0].mxu0
  %136 = vmatprep.mubr.f32.mxu0 0.0
  %137 = vmatmul.mubr.f32.gmra.mrb[0].mxu0 %v38
  %v138 = vpop.f32.mrb[0].mxu0
  %v139 = vadd.f32 0.0, %v138
  %v140 = vpop.f32.mrb[0].mxu0
  %141 = vmatprep.mubr.f32.mxu0 0.0
  %142 = vmatmul.mubr.f32.gmra.mrb[0].mxu0 %v39
  %v143 = vpop.f32.mrb[0].mxu0
  %v144 = vadd.f32 0.0, %v143
  %v145 = vpop.f32.mrb[0].mxu0
  %146 = vmatprep.mubr.f32.mxu0 0.0
  %147 = vmatmul.mubr.f32.gmra.mrb[0].mxu0 %v40
  %v148 = vpop.f32.mrb[0].mxu0
  %v149 = vadd.f32 0.0, %v148
  %v150 = vpop.f32.mrb[0].mxu0
  %151 = vmatprep.mubr.f32.mxu0 0.0
  %152 = vmatmul.mubr.f32.gmra.mrb[0].mxu0 %v41
  %v153 = vpop.f32.mrb[0].mxu0
  %v154 = vadd.f32 0.0, %v153
  %v155 = vpop.f32.mrb[0].mxu0
  %156 = vdwg.mxu0
  %vm157 = vcmask 130048
  %v159 = vsel %vm157, %v18, 0
  %v162 = vsel %vm157, %v19, 0
  %164 = vmatprep.subr.mxu0 0.0
  %165 = vmatpush1.msra.mxu0 %v109
  %166 = vmatprep.subr.mxu0 0.0
  %167 = vmatpush1.msra.mxu0 %v114
  %168 = vmatprep.subr.mxu0 0.0
  %169 = vmatpush1.msra.mxu0 0.0
  %170 = vmatprep.subr.mxu0 0.0
  %171 = vmatpush1.msra.mxu0 0.0
  %172 = vmatprep.subr.mxu0 0.0
  %173 = vmatpush1.msra.mxu0 0.0
  %174 = vmatprep.subr.mxu0 0.0
  %175 = vmatpush1.msra.mxu0 0.0
  %176 = vmatprep.subr.mxu0 0.0
  %177 = vmatpush1.msra.mxu0 0.0
  %178 = vmatprep.subr.mxu0 0.0
  %179 = vmatpush1.msra.mxu0 0.0
  %180 = vmatprep.subr.mxu0 0.0
  %181 = vmatpush1.msra.mxu0 0.0
  %182 = vmatprep.subr.mxu0 0.0
  %183 = vmatpush1.msra.mxu0 0.0
  %184 = vmatprep.subr.mxu0 0.0
  %185 = vmatpush1.msra.mxu0 0.0
  %186 = vmatprep.subr.mxu0 0.0
  %187 = vmatpush1.msra.mxu0 0.0
  %188 = vmatprep.subr.mxu0 0.0
  %189 = vmatpush1.msra.mxu0 0.0
  %190 = vmatprep.subr.mxu0 0.0
  %191 = vmatpush1.msra.mxu0 0.0
  %192 = vmatprep.subr.mxu0 0.0
  %193 = vmatpush1.msra.mxu0 0.0
  %194 = vmatprep.subr.mxu0 0.0
  %195 = vmatpush1.msra.mxu0 0.0
  %196 = vmatprep.subr.mxu0 0.0
  %197 = vmatpush1.msra.mxu0 0.0
  %198 = vmatprep.subr.mxu0 0.0
  %199 = vmatpush1.msra.mxu0 0.0
  %200 = vmatprep.subr.mxu0 0.0
  %201 = vmatpush1.msra.mxu0 0.0
  %202 = vmatprep.subr.mxu0 0.0
  %203 = vmatpush1.msra.mxu0 0.0
  %204 = vmatprep.subr.mxu0 0.0
  %205 = vmatpush1.msra.mxu0 0.0
  %206 = vmatprep.subr.mxu0 0.0
  %207 = vmatpush1.msra.mxu0 0.0
  %208 = vmatprep.subr.mxu0 0.0
  %209 = vmatpush1.msra.mxu0 0.0
  %210 = vmatprep.subr.mxu0 0.0
  %211 = vmatpush1.msra.mxu0 0.0
  %212 = vmatprep.subr.mxu0 0.0
  %213 = vmatpush1.msra.mxu0 0.0
  %214 = vmatprep.subr.mxu0 0.0
  %215 = vmatpush1.msra.mxu0 0.0
  %216 = vmatprep.subr.mxu0 0.0
  %217 = vmatpush1.msra.mxu0 0.0
  %218 = vmatprep.subr.mxu0 0.0
  %219 = vmatpush1.msra.mxu0 0.0
  %220 = vmatprep.subr.mxu0 0.0
  %221 = vmatpush1.msra.mxu0 0.0
  %222 = vmatprep.subr.mxu0 0.0
  %223 = vmatpush1.msra.mxu0 0.0
  %224 = vmatprep.subr.mxu0 0.0
  %225 = vmatpush1.msra.mxu0 0.0
  %226 = vmatprep.subr.mxu0 0.0
  %227 = vmatpush1.msra.mxu0 0.0
  %228 = vmatprep.mubr.f32.mxu0 0.0
  %229 = vmatmul.mubr.f32.gmra.mrb[0].mxu0 %v159
  %v230 = vpop.f32.mrb[0].mxu0
  %v231 = vadd.f32 0.0, %v230
  %v232 = vpop.f32.mrb[0].mxu0
  %233 = vmatprep.mubr.f32.mxu0 0.0
  %234 = vmatmul.mubr.f32.gmra.mrb[0].mxu0 %v162
  %v235 = vpop.f32.mrb[0].mxu0
  %v236 = vadd.f32 0.0, %v235
  %v237 = vpop.f32.mrb[0].mxu0
  %238 = vdwg.mxu0
  %239 = vmatprep.subr.mxu0 0.0
  %240 = vmatpush1.msra.mxu0 %v119
  %241 = vmatprep.subr.mxu0 0.0
  %242 = vmatpush1.msra.mxu0 %v124
  %243 = vmatprep.subr.mxu0 0.0
  %244 = vmatpush1.msra.mxu0 0.0
  %245 = vmatprep.subr.mxu0 0.0
  %246 = vmatpush1.msra.mxu0 0.0
  %247 = vmatprep.subr.mxu0 0.0
  %248 = vmatpush1.msra.mxu0 0.0
  %249 = vmatprep.subr.mxu0 0.0
  %250 = vmatpush1.msra.mxu0 0.0
  %251 = vmatprep.subr.mxu0 0.0
  %252 = vmatpush1.msra.mxu0 0.0
  %253 = vmatprep.subr.mxu0 0.0
  %254 = vmatpush1.msra.mxu0 0.0
  %255 = vmatprep.subr.mxu0 0.0
  %256 = vmatpush1.msra.mxu0 0.0
  %257 = vmatprep.subr.mxu0 0.0
  %258 = vmatpush1.msra.mxu0 0.0
  %259 = vmatprep.subr.mxu0 0.0
  %260 = vmatpush1.msra.mxu0 0.0
  %261 = vmatprep.subr.mxu0 0.0
  %262 = vmatpush1.msra.mxu0 0.0
  %263 = vmatprep.subr.mxu0 0.0
  %264 = vmatpush1.msra.mxu0 0.0
  %265 = vmatprep.subr.mxu0 0.0
  %266 = vmatpush1.msra.mxu0 0.0
  %267 = vmatprep.subr.mxu0 0.0
  %268 = vmatpush1.msra.mxu0 0.0
  %269 = vmatprep.subr.mxu0 0.0
  %270 = vmatpush1.msra.mxu0 0.0
  %271 = vmatprep.subr.mxu0 0.0
  %272 = vmatpush1.msra.mxu0 0.0
  %273 = vmatprep.subr.mxu0 0.0
  %274 = vmatpush1.msra.mxu0 0.0
  %275 = vmatprep.subr.mxu0 0.0
  %276 = vmatpush1.msra.mxu0 0.0
  %277 = vmatprep.subr.mxu0 0.0
  %278 = vmatpush1.msra.mxu0 0.0
  %279 = vmatprep.subr.mxu0 0.0
  %280 = vmatpush1.msra.mxu0 0.0
  %281 = vmatprep.subr.mxu0 0.0
  %282 = vmatpush1.msra.mxu0 0.0
  %283 = vmatprep.subr.mxu0 0.0
  %284 = vmatpush1.msra.mxu0 0.0
  %285 = vmatprep.subr.mxu0 0.0
  %286 = vmatpush1.msra.mxu0 0.0
  %287 = vmatprep.subr.mxu0 0.0
  %288 = vmatpush1.msra.mxu0 0.0
  %289 = vmatprep.subr.mxu0 0.0
  %290 = vmatpush1.msra.mxu0 0.0
  %291 = vmatprep.subr.mxu0 0.0
  %292 = vmatpush1.msra.mxu0 0.0
  %293 = vmatprep.subr.mxu0 0.0
  %294 = vmatpush1.msra.mxu0 0.0
  %295 = vmatprep.subr.mxu0 0.0
  %296 = vmatpush1.msra.mxu0 0.0
  %297 = vmatprep.subr.mxu0 0.0
  %298 = vmatpush1.msra.mxu0 0.0
  %299 = vmatprep.subr.mxu0 0.0
  %300 = vmatpush1.msra.mxu0 0.0
  %301 = vmatprep.subr.mxu0 0.0
  %302 = vmatpush1.msra.mxu0 0.0
  %303 = vmatprep.mubr.f32.mxu0 0.0
  %304 = vmatmul.mubr.f32.gmra.mrb[0].mxu0 %v159
  %v305 = vpop.f32.mrb[0].mxu0
  %v306 = vadd.f32 0.0, %v305
  %v307 = vpop.f32.mrb[0].mxu0
  %308 = vmatprep.mubr.f32.mxu0 0.0
  %309 = vmatmul.mubr.f32.gmra.mrb[0].mxu0 %v162
  %v310 = vpop.f32.mrb[0].mxu0
  %v311 = vadd.f32 0.0, %v310
  %v312 = vpop.f32.mrb[0].mxu0
  %313 = vdwg.mxu0
  %314 = vmatprep.subr.mxu0 0.0
  %315 = vmatpush1.msra.mxu0 %v129
  %316 = vmatprep.subr.mxu0 0.0
  %317 = vmatpush1.msra.mxu0 %v134
  %318 = vmatprep.subr.mxu0 0.0
  %319 = vmatpush1.msra.mxu0 0.0
  %320 = vmatprep.subr.mxu0 0.0
  %321 = vmatpush1.msra.mxu0 0.0
  %322 = vmatprep.subr.mxu0 0.0
  %323 = vmatpush1.msra.mxu0 0.0
  %324 = vmatprep.subr.mxu0 0.0
  %325 = vmatpush1.msra.mxu0 0.0
  %326 = vmatprep.subr.mxu0 0.0
  %327 = vmatpush1.msra.mxu0 0.0
  %328 = vmatprep.subr.mxu0 0.0
  %329 = vmatpush1.msra.mxu0 0.0
  %330 = vmatprep.subr.mxu0 0.0
  %331 = vmatpush1.msra.mxu0 0.0
  %332 = vmatprep.subr.mxu0 0.0
  %333 = vmatpush1.msra.mxu0 0.0
  %334 = vmatprep.subr.mxu0 0.0
  %335 = vmatpush1.msra.mxu0 0.0
  %336 = vmatprep.subr.mxu0 0.0
  %337 = vmatpush1.msra.mxu0 0.0
  %338 = vmatprep.subr.mxu0 0.0
  %339 = vmatpush1.msra.mxu0 0.0
  %340 = vmatprep.subr.mxu0 0.0
  %341 = vmatpush1.msra.mxu0 0.0
  %342 = vmatprep.subr.mxu0 0.0
  %343 = vmatpush1.msra.mxu0 0.0
  %344 = vmatprep.subr.mxu0 0.0
  %345 = vmatpush1.msra.mxu0 0.0
  %346 = vmatprep.subr.mxu0 0.0
  %347 = vmatpush1.msra.mxu0 0.0
  %348 = vmatprep.subr.mxu0 0.0
  %349 = vmatpush1.msra.mxu0 0.0
  %350 = vmatprep.subr.mxu0 0.0
  %351 = vmatpush1.msra.mxu0 0.0
  %352 = vmatprep.subr.mxu0 0.0
  %353 = vmatpush1.msra.mxu0 0.0
  %354 = vmatprep.subr.mxu0 0.0
  %355 = vmatpush1.msra.mxu0 0.0
  %356 = vmatprep.subr.mxu0 0.0
  %357 = vmatpush1.msra.mxu0 0.0
  %358 = vmatprep.subr.mxu0 0.0
  %359 = vmatpush1.msra.mxu0 0.0
  %360 = vmatprep.subr.mxu0 0.0
  %361 = vmatpush1.msra.mxu0 0.0
  %362 = vmatprep.subr.mxu0 0.0
  %363 = vmatpush1.msra.mxu0 0.0
  %364 = vmatprep.subr.mxu0 0.0
  %365 = vmatpush1.msra.mxu0 0.0
  %366 = vmatprep.subr.mxu0 0.0
  %367 = vmatpush1.msra.mxu0 0.0
  %368 = vmatprep.subr.mxu0 0.0
  %369 = vmatpush1.msra.mxu0 0.0
  %370 = vmatprep.subr.mxu0 0.0
  %371 = vmatpush1.msra.mxu0 0.0
  %372 = vmatprep.subr.mxu0 0.0
  %373 = vmatpush1.msra.mxu0 0.0
  %374 = vmatprep.subr.mxu0 0.0
  %375 = vmatpush1.msra.mxu0 0.0
  %376 = vmatprep.subr.mxu0 0.0
  %377 = vmatpush1.msra.mxu0 0.0
  %378 = vmatprep.mubr.f32.mxu0 0.0
  %379 = vmatmul.mubr.f32.gmra.mrb[0].mxu0 %v159
  %v380 = vpop.f32.mrb[0].mxu0
  %v381 = vadd.f32 0.0, %v380
  %v382 = vpop.f32.mrb[0].mxu0
  %383 = vmatprep.mubr.f32.mxu0 0.0
  %384 = vmatmul.mubr.f32.gmra.mrb[0].mxu0 %v162
  %v385 = vpop.f32.mrb[0].mxu0
  %v386 = vadd.f32 0.0, %v385
  %v387 = vpop.f32.mrb[0].mxu0
  %388 = vdwg.mxu0
  %389 = vmatprep.subr.mxu0 0.0
  %390 = vmatpush1.msra.mxu0 %v139
  %391 = vmatprep.subr.mxu0 0.0
  %392 = vmatpush1.msra.mxu0 %v144
  %393 = vmatprep.subr.mxu0 0.0
  %394 = vmatpush1.msra.mxu0 0.0
  %395 = vmatprep.subr.mxu0 0.0
  %396 = vmatpush1.msra.mxu0 0.0
  %397 = vmatprep.subr.mxu0 0.0
  %398 = vmatpush1.msra.mxu0 0.0
  %399 = vmatprep.subr.mxu0 0.0
  %400 = vmatpush1.msra.mxu0 0.0
  %401 = vmatprep.subr.mxu0 0.0
  %402 = vmatpush1.msra.mxu0 0.0
  %403 = vmatprep.subr.mxu0 0.0
  %404 = vmatpush1.msra.mxu0 0.0
  %405 = vmatprep.subr.mxu0 0.0
  %406 = vmatpush1.msra.mxu0 0.0
  %407 = vmatprep.subr.mxu0 0.0
  %408 = vmatpush1.msra.mxu0 0.0
  %409 = vmatprep.subr.mxu0 0.0
  %410 = vmatpush1.msra.mxu0 0.0
  %411 = vmatprep.subr.mxu0 0.0
  %412 = vmatpush1.msra.mxu0 0.0
  %413 = vmatprep.subr.mxu0 0.0
  %414 = vmatpush1.msra.mxu0 0.0
  %415 = vmatprep.subr.mxu0 0.0
  %416 = vmatpush1.msra.mxu0 0.0
  %417 = vmatprep.subr.mxu0 0.0
  %418 = vmatpush1.msra.mxu0 0.0
  %419 = vmatprep.subr.mxu0 0.0
  %420 = vmatpush1.msra.mxu0 0.0
  %421 = vmatprep.subr.mxu0 0.0
  %422 = vmatpush1.msra.mxu0 0.0
  %423 = vmatprep.subr.mxu0 0.0
  %424 = vmatpush1.msra.mxu0 0.0
  %425 = vmatprep.subr.mxu0 0.0
  %426 = vmatpush1.msra.mxu0 0.0
  %427 = vmatprep.subr.mxu0 0.0
  %428 = vmatpush1.msra.mxu0 0.0
  %429 = vmatprep.subr.mxu0 0.0
  %430 = vmatpush1.msra.mxu0 0.0
  %431 = vmatprep.subr.mxu0 0.0
  %432 = vmatpush1.msra.mxu0 0.0
  %433 = vmatprep.subr.mxu0 0.0
  %434 = vmatpush1.msra.mxu0 0.0
  %435 = vmatprep.subr.mxu0 0.0
  %436 = vmatpush1.msra.mxu0 0.0
  %437 = vmatprep.subr.mxu0 0.0
  %438 = vmatpush1.msra.mxu0 0.0
  %439 = vmatprep.subr.mxu0 0.0
  %440 = vmatpush1.msra.mxu0 0.0
  %441 = vmatprep.subr.mxu0 0.0
  %442 = vmatpush1.msra.mxu0 0.0
  %443 = vmatprep.subr.mxu0 0.0
  %444 = vmatpush1.msra.mxu0 0.0
  %445 = vmatprep.subr.mxu0 0.0
  %446 = vmatpush1.msra.mxu0 0.0
  %447 = vmatprep.subr.mxu0 0.0
  %448 = vmatpush1.msra.mxu0 0.0
  %449 = vmatprep.subr.mxu0 0.0
  %450 = vmatpush1.msra.mxu0 0.0
  %451 = vmatprep.subr.mxu0 0.0
  %452 = vmatpush1.msra.mxu0 0.0
  %453 = vmatprep.mubr.f32.mxu0 0.0
  %454 = vmatmul.mubr.f32.gmra.mrb[0].mxu0 %v159
  %v455 = vpop.f32.mrb[0].mxu0
  %v456 = vadd.f32 0.0, %v455
  %v457 = vpop.f32.mrb[0].mxu0
  %458 = vmatprep.mubr.f32.mxu0 0.0
  %459 = vmatmul.mubr.f32.gmra.mrb[0].mxu0 %v162
  %v460 = vpop.f32.mrb[0].mxu0
  %v461 = vadd.f32 0.0, %v460
  %v462 = vpop.f32.mrb[0].mxu0
  %463 = vdwg.mxu0
  %464 = vmatprep.subr.mxu0 0.0
  %465 = vmatpush1.msra.mxu0 %v149
  %466 = vmatprep.subr.mxu0 0.0
  %467 = vmatpush1.msra.mxu0 %v154
  %468 = vmatprep.subr.mxu0 0.0
  %469 = vmatpush1.msra.mxu0 0.0
  %470 = vmatprep.subr.mxu0 0.0
  %471 = vmatpush1.msra.mxu0 0.0
  %472 = vmatprep.subr.mxu0 0.0
  %473 = vmatpush1.msra.mxu0 0.0
  %474 = vmatprep.subr.mxu0 0.0
  %475 = vmatpush1.msra.mxu0 0.0
  %476 = vmatprep.subr.mxu0 0.0
  %477 = vmatpush1.msra.mxu0 0.0
  %478 = vmatprep.subr.mxu0 0.0
  %479 = vmatpush1.msra.mxu0 0.0
  %480 = vmatprep.subr.mxu0 0.0
  %481 = vmatpush1.msra.mxu0 0.0
  %482 = vmatprep.subr.mxu0 0.0
  %483 = vmatpush1.msra.mxu0 0.0
  %484 = vmatprep.subr.mxu0 0.0
  %485 = vmatpush1.msra.mxu0 0.0
  %486 = vmatprep.subr.mxu0 0.0
  %487 = vmatpush1.msra.mxu0 0.0
  %488 = vmatprep.subr.mxu0 0.0
  %489 = vmatpush1.msra.mxu0 0.0
  %490 = vmatprep.subr.mxu0 0.0
  %491 = vmatpush1.msra.mxu0 0.0
  %492 = vmatprep.subr.mxu0 0.0
  %493 = vmatpush1.msra.mxu0 0.0
  %494 = vmatprep.subr.mxu0 0.0
  %495 = vmatpush1.msra.mxu0 0.0
  %496 = vmatprep.subr.mxu0 0.0
  %497 = vmatpush1.msra.mxu0 0.0
  %498 = vmatprep.subr.mxu0 0.0
  %499 = vmatpush1.msra.mxu0 0.0
  %500 = vmatprep.subr.mxu0 0.0
  %501 = vmatpush1.msra.mxu0 0.0
  %502 = vmatprep.subr.mxu0 0.0
  %503 = vmatpush1.msra.mxu0 0.0
  %504 = vmatprep.subr.mxu0 0.0
  %505 = vmatpush1.msra.mxu0 0.0
  %506 = vmatprep.subr.mxu0 0.0
  %507 = vmatpush1.msra.mxu0 0.0
  %508 = vmatprep.subr.mxu0 0.0
  %509 = vmatpush1.msra.mxu0 0.0
  %510 = vmatprep.subr.mxu0 0.0
  %511 = vmatpush1.msra.mxu0 0.0
  %512 = vmatprep.subr.mxu0 0.0
  %513 = vmatpush1.msra.mxu0 0.0
  %514 = vmatprep.subr.mxu0 0.0
  %515 = vmatpush1.msra.mxu0 0.0
  %516 = vmatprep.subr.mxu0 0.0
  %517 = vmatpush1.msra.mxu0 0.0
  %518 = vmatprep.subr.mxu0 0.0
  %519 = vmatpush1.msra.mxu0 0.0
  %520 = vmatprep.subr.mxu0 0.0
  %521 = vmatpush1.msra.mxu0 0.0
  %522 = vmatprep.subr.mxu0 0.0
  %523 = vmatpush1.msra.mxu0 0.0
  %524 = vmatprep.subr.mxu0 0.0
  %525 = vmatpush1.msra.mxu0 0.0
  %526 = vmatprep.subr.mxu0 0.0
  %527 = vmatpush1.msra.mxu0 0.0
  %528 = vmatprep.mubr.f32.mxu0 0.0
  %529 = vmatmul.mubr.f32.gmra.mrb[0].mxu0 %v159
  %v530 = vpop.f32.mrb[0].mxu0
  %v531 = vadd.f32 0.0, %v530
  %v532 = vpop.f32.mrb[0].mxu0
  %533 = vmatprep.mubr.f32.mxu0 0.0
  %534 = vmatmul.mubr.f32.gmra.mrb[0].mxu0 %v162
  %v535 = vpop.f32.mrb[0].mxu0
  %v536 = vadd.f32 0.0, %v535
  %v537 = vpop.f32.mrb[0].mxu0
  %538 = vdwg.mxu0
  %v539 = vmul.f32 %v231, %v231
  %v540 = vmul.f32 %v236, %v236
  %v541 = vmul.f32 %v306, %v306
  %v542 = vmul.f32 %v311, %v311
  %v543 = vmul.f32 %v231, %v306
  %v544 = vmul.f32 %v236, %v311
  %v545 = vsub.f32 %v381, %v539
  %v546 = vsub.f32 %v386, %v540
  %v547 = vsub.f32 %v456, %v541
  %v548 = vsub.f32 %v461, %v542
  %v549 = vsub.f32 %v531, %v543
  %v550 = vsub.f32 %v536, %v544
  %v551 = vmul.f32 %v543, 2.0
  %v552 = vmul.f32 %v544, 2.0
  %v553 = vadd.f32 %v551, 0.0001
  %v554 = vadd.f32 %v552, 0.0001
  %v555 = vmul.f32 %v549, 2.0
  %v556 = vmul.f32 %v550, 2.0
  %v557 = vadd.f32 %v555, 0.0009
  %v558 = vadd.f32 %v556, 0.0009
  %v559 = vmul.f32 %v553, %v557
  %v560 = vmul.f32 %v554, %v558
  %v561 = vadd.f32 %v539, %v541
  %v562 = vadd.f32 %v540, %v542
  %v563 = vadd.f32 %v561, 0.0001
  %v564 = vadd.f32 %v562, 0.0001
  %v565 = vadd.f32 %v545, %v547
  %v566 = vadd.f32 %v546, %v548
  %v567 = vadd.f32 %v565, 0.0009
  %v568 = vadd.f32 %v566, 0.0009
  %v569 = vmul.f32 %v563, %v567
  %v570 = vmul.f32 %v564, %v568
  %v571 = vrcp.pop %v569
  %v572 = vrcp.pop %v570
  %v573 = vmul.f32 %v569, %v571
  %v574 = vmul.f32 %v570, %v572
  %v575 = vsub.f32 2.0, %v573
  %v576 = vsub.f32 2.0, %v574
  %v577 = vmul.f32 %v571, %v575
  %v578 = vmul.f32 %v572, %v576
  %v579 = vmul.f32 %v559, %v577
  %v580 = vmul.f32 %v560, %v578
  %v581 = vsub.f32 %v14, %v16
  %v582 = vsub.f32 %v15, %v17
  %v583 = vand.u32 2147483647, %v581
  %v584 = vand.u32 2147483647, %v582
  %v585 = vadd.f32 %v583, %v584
  %v586 = vrot.slane %v585, 4
  %v587 = vadd.f32 %v585, %v586
  %v588 = vrot.slane %v587, 2
  %v589 = vadd.f32 %v587, %v588
  %v590 = vrot.slane %v589, 1
  %v591 = vadd.f32 %v589, %v590
  %v592 = vmul.f32 %v581, %v581
  %v593 = vmul.f32 %v582, %v582
  %v594 = vadd.f32 %v592, %v593
  %v595 = vrot.slane %v594, 4
  %v596 = vadd.f32 %v594, %v595
  %v597 = vrot.slane %v596, 2
  %v598 = vadd.f32 %v596, %v597
  %v599 = vrot.slane %v598, 1
  %v600 = vadd.f32 %v598, %v599
  %v601 = vadd.f32 %v579, %v580
  %v602 = vrot.slane %v601, 4
  %v603 = vadd.f32 %v601, %v602
  %v604 = vrot.slane %v603, 2
  %v605 = vadd.f32 %v603, %v604
  %v606 = vrot.slane %v605, 1
  %v607 = vadd.f32 %v605, %v606
  %vm608 = vcmask 1040384
  %v609 = vsel %vm608, %v591, %v600
  %vm610 = vcmask 1041408
  %v611 = vsel %vm610, %v609, %v607
  %612 = vst [vmem:[%s3] sm:$0x7] %v611
  // Predicated region
  $region14: #{total_loss.1} parent=0 // pred_check
    _
  $region15: #{total_loss.1} parent=0 // pred_check_branch
    %614 = sbr.rel (0) target = $region17
  $region16: #{total_loss.1} parent=0 // pred_region
    _
  $region17: #{total_loss.1} parent=0 // pred_fallthru
    _
  // Predicated region
  $region18: #{total_loss.1} parent=0 // pred_check
    _
  $region19: #{total_loss.1} parent=0 // pred_check_branch
    %616 = sbr.rel (0) target = $region21
  $region20: #{total_loss.1} parent=0 // pred_region
    _
  $region21: #{total_loss.1} parent=0 // pred_fallthru
    _

</llo_original>
